<compile_context>
chip_gen: v7x
topology: tpu7x:2x2x1
jax: 0.10.0
libtpu: 0.0.40
codegen_flags: <defaults>
</compile_context>

<pallas_src>
import functools

import numpy as np
import jax
import jax.numpy as jnp
from jax import lax
from jax.experimental import pallas as pl
from jax.experimental.pallas import tpu as pltpu

_LANES = 128
_SUBLANES = 8


def _detect_loss_kernel(pred_ref, targ_ref, out_ref, acc_ref, *, S, B, C,
                        lambda_coord, lambda_noobj, r_strips):
    """Processes one (NF, Rtile, 128) tile of cells, strip-mined over 8-row vregs."""
    i = pl.program_id(1)

    @pl.when(i == 0)
    def _init():
        acc_ref[...] = jnp.zeros_like(acc_ref)

    inv_S = jnp.float32(1.0 / S)
    half = jnp.float32(0.5)
    lc = jnp.float32(lambda_coord)
    ln = jnp.float32(lambda_noobj)

    def strip_body(s, acc):
        r = pl.multiple_of(s * _SUBLANES, _SUBLANES)

        def fp(c):   # pred field c -> (8, 128) f32 (cast on load; bf16 inputs ok)
            return pred_ref[c, pl.ds(r, _SUBLANES), :].astype(jnp.float32)

        def ft(c):   # target field c -> (8, 128) f32
            return targ_ref[c, pl.ds(r, _SUBLANES), :].astype(jnp.float32)

        # Hoisted single loads of all box fields (reused by IoU, select, losses).
        p_box = [[fp(5 * b + k) for k in range(5)] for b in range(B)]
        t_box = [[ft(5 * b + k) for k in range(4)] for b in range(B)]
        t_conf = [ft(5 * b + 4) for b in range(B)]

        t_conf0 = t_conf[0]
        is_coord = t_conf0 > 0.0
        is_noobj = t_conf0 == 0.0

        # ---- no-object confidence loss (per cell) ---------------------------
        noobj_row = jnp.zeros((_SUBLANES, _LANES), jnp.float32)
        for b in range(B):
            d = p_box[b][4] - t_conf[b]
            noobj_row = noobj_row + d * d

        # ---- class loss (per cell): chain of dense VPU FMAs ------------------
        cls_row = jnp.zeros((_SUBLANES, _LANES), jnp.float32)
        for c in range(C):
            d = fp(5 * B + c) - ft(5 * B + c)
            cls_row = cls_row + d * d

        # ---- target box (box 0) corners / area -------------------------------
        tcx = t_box[0][0] * inv_S
        tcy = t_box[0][1] * inv_S
        tw = t_box[0][2]
        th = t_box[0][3]
        t_x1 = tcx - half * tw
        t_x2 = tcx + half * tw
        t_y1 = tcy - half * th
        t_y2 = tcy + half * th
        t_area = tw * th                   # == (t_x2 - t_x1) * (t_y2 - t_y1)

        def inter_union(b):
            px, py, pw, ph, _ = p_box[b]
            pcx = px * inv_S
            pcy = py * inv_S
            phw = half * pw
            phh = half * ph
            iw = jnp.maximum(jnp.minimum(pcx + phw, t_x2) -
                             jnp.maximum(pcx - phw, t_x1), 0.0)
            ih = jnp.maximum(jnp.minimum(pcy + phh, t_y2) -
                             jnp.maximum(pcy - phh, t_y1), 0.0)
            inter = iw * ih
            union = pw * ph + t_area - inter   # p_area simplifies to pw*ph
            return inter, union

        # Responsible-box (first-occurrence argmax of IoU) via cross-multiplied
        # comparisons: a/b > c/d  <=>  a*d > c*b for positive unions, so only
        # ONE divide per cell (max_iou of the chosen box) is needed.
        best_inter, best_union = inter_union(0)
        px_r, py_r, pw_r, ph_r, pc_r = p_box[0]
        tx_r, ty_r, tw_r, th_r = t_box[0]
        for b in range(1, B):
            inter_b, union_b = inter_union(b)
            better = inter_b * best_union > best_inter * union_b  # strict: ties keep earliest
            best_inter = jnp.where(better, inter_b, best_inter)
            best_union = jnp.where(better, union_b, best_union)
            px_r = jnp.where(better, p_box[b][0], px_r)
            py_r = jnp.where(better, p_box[b][1], py_r)
            pw_r = jnp.where(better, p_box[b][2], pw_r)
            ph_r = jnp.where(better, p_box[b][3], ph_r)
            pc_r = jnp.where(better, p_box[b][4], pc_r)
            tx_r = jnp.where(better, t_box[b][0], tx_r)
            ty_r = jnp.where(better, t_box[b][1], ty_r)
            tw_r = jnp.where(better, t_box[b][2], tw_r)
            th_r = jnp.where(better, t_box[b][3], th_r)

        max_iou = best_inter / best_union     # exact divide, matches reference

        dx = px_r - tx_r
        dy = py_r - ty_r
        xy_row = dx * dx + dy * dy
        # max(., 0) only guards sqrt(NaN) for negative raw outputs.
        sw = jnp.sqrt(jnp.maximum(pw_r, 0.0)) - jnp.sqrt(jnp.maximum(tw_r, 0.0))
        sh = jnp.sqrt(jnp.maximum(ph_r, 0.0)) - jnp.sqrt(jnp.maximum(th_r, 0.0))
        wh_row = sw * sw + sh * sh
        dc = pc_r - max_iou
        obj_row = dc * dc

        coord_row = lc * (xy_row + wh_row) + obj_row + cls_row
        # jnp.where is a true select: NaN IoU on padded / no-object cells never leaks.
        total_strip = (jnp.where(is_coord, coord_row, 0.0) +
                       jnp.where(is_noobj, ln * noobj_row, 0.0))
        return acc + total_strip

    tile_acc = lax.fori_loop(0, r_strips, strip_body,
                             jnp.zeros((_SUBLANES, _LANES), jnp.float32),
                             unroll=min(2, r_strips))
    acc_ref[...] += tile_acc      # vector accumulate; no per-tile cross-lane reduce

    @pl.when(i == pl.num_programs(1) - 1)
    def _finalize():
        out_ref[0, 0] = jnp.sum(acc_ref[...])   # single reduce + scalar store per shard


def detect_loss_pallas(pred, target, *, S=7, B=2, C=20,
                       lambda_coord=5.0, lambda_noobj=0.5, r_tile=256):
    """pred, target: (batch, S, S, 5*B + C), f32 or bf16 -> scalar f32 loss."""
    assert pred.shape == target.shape
    assert r_tile % _SUBLANES == 0
    batch = pred.shape[0]
    N = 5 * B + C
    M = batch * S * S
    NF = -(-N // _SUBLANES) * _SUBLANES      # fields padded to a sublane multiple

    R = -(-M // _LANES)                      # rows of 128 cells
    if R <= r_tile:
        Rtile = max(_SUBLANES, -(-R // _SUBLANES) * _SUBLANES)
        Rpad = Rtile
    else:
        Rtile = r_tile
        Rpad = -(-R // Rtile) * Rtile
    num_tiles = Rpad // Rtile
    # Shard the tile loop across 2 TensorCores when each core still gets >= 2
    # tiles to double-buffer (v7x megacore); harmless sequential loop on 1-TC chips.
    num_shards = 2 if (num_tiles % 2 == 0 and num_tiles >= 4) else 1
    tiles_per_shard = num_tiles // num_shards
    Mpad = Rpad * _LANES

    def relayout(x):
        # (batch, S, S, N) -> (NF, Rpad, 128): per-cell fields on the leading
        # (untiled) axis, grid cells lane-dense on the (sublane, lane) axes.
        # TODO(synk): ideally the producing layer emits this layout directly (or
        # the transpose+pad is fused/donated in the surrounding jit); done here
        # it is one extra HBM pass over both tensors.
        x2 = x.reshape(M, N).T
        x2 = jnp.pad(x2, ((0, NF - N), (0, Mpad - M)))
        return x2.reshape(NF, Rpad, _LANES)

    p3 = relayout(pred)
    t3 = relayout(target)

    kern = functools.partial(_detect_loss_kernel, S=S, B=B, C=C,
                             lambda_coord=lambda_coord,
                             lambda_noobj=lambda_noobj,
                             r_strips=Rtile // _SUBLANES)

    idx_map = lambda g, i: (0, g * tiles_per_shard + i, 0)
    partials = pl.pallas_call(
        kern,
        out_shape=jax.ShapeDtypeStruct((num_shards, 1), jnp.float32),
        grid=(num_shards, tiles_per_shard),
        in_specs=[pl.BlockSpec((NF, Rtile, _LANES), idx_map),
                  pl.BlockSpec((NF, Rtile, _LANES), idx_map)],
        out_specs=pl.BlockSpec((1, 1), lambda g, i: (g, 0),
                               memory_space=pltpu.MemorySpace.SMEM),
        scratch_shapes=[pltpu.VMEM((_SUBLANES, _LANES), jnp.float32)],
        compiler_params=pltpu.CompilerParams(
            dimension_semantics=("parallel", "arbitrary"),
            # Explicit limit so Rtile=256 (16 MiB double-buffered blocks) also
            # passes v5e's 16 MiB scoped-VMEM default; well under v7x's 64 MiB.
            vmem_limit_bytes=40 * 1024 * 1024),
    )(p3, t3)
    return jnp.sum(partials) / jnp.float32(batch)


def _torch_style_reference(pred, targ, S, B, C, lc, ln):
    """Direct numpy transcription of the PyTorch forward (float64)."""
    pred = np.asarray(pred, dtype=np.float64)
    targ = np.asarray(targ, dtype=np.float64)
    N = 5 * B + C
    bs = pred.shape[0]
    coord_mask = targ[..., 4] > 0
    noobj_mask = targ[..., 4] == 0

    coord_pred = pred[coord_mask].reshape(-1, N)
    coord_targ = targ[coord_mask].reshape(-1, N)
    bbox_pred = coord_pred[:, :5 * B].reshape(-1, 5)
    class_pred = coord_pred[:, 5 * B:]
    bbox_targ = coord_targ[:, :5 * B].reshape(-1, 5)
    class_targ = coord_targ[:, 5 * B:]

    noobj_pred = pred[noobj_mask].reshape(-1, N)
    noobj_targ = targ[noobj_mask].reshape(-1, N)
    conf_idx = [4 + b * 5 for b in range(B)]
    loss_noobj = np.sum((noobj_pred[:, conf_idx] - noobj_targ[:, conf_idx]) ** 2)

    def to_xyxy(a):
        out = np.zeros((a.shape[0], 4))
        out[:, :2] = a[:, :2] / S - 0.5 * a[:, 2:4]
        out[:, 2:4] = a[:, :2] / S + 0.5 * a[:, 2:4]
        return out

    loss_xy = loss_wh = loss_obj = 0.0
    for i in range(0, bbox_targ.shape[0], B):
        p = bbox_pred[i:i + B]
        t = bbox_targ[i:i + 1]
        pxy = to_xyxy(p)
        txy = to_xyxy(t)
        lt = np.maximum(pxy[:, None, :2], txy[None, :, :2])
        rb = np.minimum(pxy[:, None, 2:], txy[None, :, 2:])
        wh = np.clip(rb - lt, 0.0, None)
        inter = wh[..., 0] * wh[..., 1]
        a1 = (pxy[:, 2] - pxy[:, 0]) * (pxy[:, 3] - pxy[:, 1])
        a2 = (txy[:, 2] - txy[:, 0]) * (txy[:, 3] - txy[:, 1])
        union = a1[:, None] + a2[None, :] - inter
        iou = inter / union                       # (B, 1)
        j = int(np.argmax(iou[:, 0]))
        max_iou = iou[j, 0]
        bp = bbox_pred[i + j]
        bt = bbox_targ[i + j]
        loss_xy += np.sum((bp[:2] - bt[:2]) ** 2)
        loss_wh += np.sum((np.sqrt(bp[2:4]) - np.sqrt(bt[2:4])) ** 2)
        loss_obj += (bp[4] - max_iou) ** 2

    loss_class = np.sum((class_pred - class_targ) ** 2)
    total = lc * (loss_xy + loss_wh) + loss_obj + ln * loss_noobj + loss_class
    return total / float(bs)


def _make_inputs(batch, S, N, key):
    k1, k2, k3 = jax.random.split(key, 3)
    # Positive boxes so sqrt(w), sqrt(h) are well defined (as the torch code assumes).
    pred = jax.random.uniform(k1, (batch, S, S, N), jnp.float32, 0.05, 0.95)
    targ = jax.random.uniform(k2, (batch, S, S, N), jnp.float32, 0.10, 0.90)
    # ~40% of cells contain an object; the rest are all-zero (no-object) targets.
    obj = jax.random.bernoulli(k3, 0.4, (batch, S, S)).astype(jnp.float32)
    targ = targ * obj[..., None]
    return pred, targ


if __name__ == "__main__":
    S, B, C = 7, 2, 20
    N = 5 * B + C
    key = jax.random.PRNGKey(0)

    # (batch, r_tile) configs: single tile / multi-strip+multi-tile / 2-shard path.
    configs = [(2, 256), (48, 16), (112, 8)]
    for idx, (batch, r_tile) in enumerate(configs):
        key, sub = jax.random.split(key)
        pred, targ = _make_inputs(batch, S, N, sub)
        loss_fn = jax.jit(functools.partial(
            detect_loss_pallas, S=S, B=B, C=C,
            lambda_coord=5.0, lambda_noobj=0.5, r_tile=r_tile))
        loss = jax.block_until_ready(loss_fn(pred, targ))
        ref = _torch_style_reference(np.array(pred), np.array(targ),
                                     S, B, C, 5.0, 0.5)
        np.testing.assert_allclose(float(loss), ref, rtol=1e-3, atol=1e-3)

    print("KERNEL_OK")
</pallas_src>

<mosaic_0001>
module attributes {stable_mosaic.version = 11 : i64} {
  func.func @_detect_loss_kernel(%arg0: i32, %arg1: i32, %arg2: memref<32x8x128xf32, #tpu.memory_space<vmem>>, %arg3: memref<32x8x128xf32, #tpu.memory_space<vmem>>, %arg4: memref<1x1xf32, #tpu.memory_space<smem>>, %arg5: memref<8x128xf32, #tpu.memory_space<vmem>>) attributes {dimension_semantics = [#tpu.dimension_semantics<parallel>, #tpu.dimension_semantics<arbitrary>], iteration_bounds = array<i64: 1, 1>, scalar_prefetch = 0 : i64, scratch_operands = 1 : i64, tpu.core_type = #tpu.core_type<tc>, window_params = [{transform_indices = @transform_0, window_bounds = array<i64: 32, 8, 128>}, {transform_indices = @transform_1, window_bounds = array<i64: 32, 8, 128>}, {transform_indices = @transform_2, window_bounds = array<i64: 1, 1>}]} {
    %c0_i32 = arith.constant 0 : i32
    %0 = arith.cmpi eq, %arg1, %c0_i32 : i32
    %1 = arith.extui %0 : i1 to i32
    %c0_i32_0 = arith.constant 0 : i32
    %2 = arith.cmpi ne, %1, %c0_i32_0 : i32
    scf.if %2 {
      %cst_116 = arith.constant 0.000000e+00 : f32
      %385 = vector.broadcast %cst_116 : f32 to vector<8x128xf32>
      %c0_117 = arith.constant 0 : index
      %c0_118 = arith.constant 0 : index
      %386 = vector.load %arg5[%c0_117, %c0_118] : memref<8x128xf32, #tpu.memory_space<vmem>>, vector<8x128xf32>
      tpu.vector_store %arg5[%c0_117, %c0_118], %385 {strides = array<i32>} : memref<8x128xf32, #tpu.memory_space<vmem>>, vector<8x128xf32>,
    } else {
    }
    %cst = arith.constant 0.000000e+00 : f32
    %3 = vector.broadcast %cst : f32 to vector<8x128xf32>
    %cst_1 = arith.constant 0.142857149 : f32
    %cst_2 = arith.constant 5.000000e-01 : f32
    %cst_3 = arith.constant 5.000000e+00 : f32
    %cst_4 = arith.constant 5.000000e-01 : f32
    %c0_i32_5 = arith.constant 0 : i32
    %c8_i32 = arith.constant 8 : i32
    %4 = arith.muli %c0_i32_5, %c8_i32 : i32
    %5 = tpu.assume_multiple %4, 8 : i32
    %c0 = arith.constant 0 : index
    %6 = arith.index_cast %5 : i32 to index
    %c0_6 = arith.constant 0 : index
    %7 = vector.load %arg2[%c0, %6, %c0_6] : memref<32x8x128xf32, #tpu.memory_space<vmem>>, vector<1x8x128xf32>
    %8 = vector.shape_cast %7 : vector<1x8x128xf32> to vector<8x128xf32>
    %c1 = arith.constant 1 : index
    %9 = arith.index_cast %5 : i32 to index
    %c0_7 = arith.constant 0 : index
    %10 = vector.load %arg2[%c1, %9, %c0_7] : memref<32x8x128xf32, #tpu.memory_space<vmem>>, vector<1x8x128xf32>
    %11 = vector.shape_cast %10 : vector<1x8x128xf32> to vector<8x128xf32>
    %c2 = arith.constant 2 : index
    %12 = arith.index_cast %5 : i32 to index
    %c0_8 = arith.constant 0 : index
    %13 = vector.load %arg2[%c2, %12, %c0_8] : memref<32x8x128xf32, #tpu.memory_space<vmem>>, vector<1x8x128xf32>
    %14 = vector.shape_cast %13 : vector<1x8x128xf32> to vector<8x128xf32>
    %c3 = arith.constant 3 : index
    %15 = arith.index_cast %5 : i32 to index
    %c0_9 = arith.constant 0 : index
    %16 = vector.load %arg2[%c3, %15, %c0_9] : memref<32x8x128xf32, #tpu.memory_space<vmem>>, vector<1x8x128xf32>
    %17 = vector.shape_cast %16 : vector<1x8x128xf32> to vector<8x128xf32>
    %c4 = arith.constant 4 : index
    %18 = arith.index_cast %5 : i32 to index
    %c0_10 = arith.constant 0 : index
    %19 = vector.load %arg2[%c4, %18, %c0_10] : memref<32x8x128xf32, #tpu.memory_space<vmem>>, vector<1x8x128xf32>
    %20 = vector.shape_cast %19 : vector<1x8x128xf32> to vector<8x128xf32>
    %c5 = arith.constant 5 : index
    %21 = arith.index_cast %5 : i32 to index
    %c0_11 = arith.constant 0 : index
    %22 = vector.load %arg2[%c5, %21, %c0_11] : memref<32x8x128xf32, #tpu.memory_space<vmem>>, vector<1x8x128xf32>
    %23 = vector.shape_cast %22 : vector<1x8x128xf32> to vector<8x128xf32>
    %c6 = arith.constant 6 : index
    %24 = arith.index_cast %5 : i32 to index
    %c0_12 = arith.constant 0 : index
    %25 = vector.load %arg2[%c6, %24, %c0_12] : memref<32x8x128xf32, #tpu.memory_space<vmem>>, vector<1x8x128xf32>
    %26 = vector.shape_cast %25 : vector<1x8x128xf32> to vector<8x128xf32>
    %c7 = arith.constant 7 : index
    %27 = arith.index_cast %5 : i32 to index
    %c0_13 = arith.constant 0 : index
    %28 = vector.load %arg2[%c7, %27, %c0_13] : memref<32x8x128xf32, #tpu.memory_space<vmem>>, vector<1x8x128xf32>
    %29 = vector.shape_cast %28 : vector<1x8x128xf32> to vector<8x128xf32>
    %c8 = arith.constant 8 : index
    %30 = arith.index_cast %5 : i32 to index
    %c0_14 = arith.constant 0 : index
    %31 = vector.load %arg2[%c8, %30, %c0_14] : memref<32x8x128xf32, #tpu.memory_space<vmem>>, vector<1x8x128xf32>
    %32 = vector.shape_cast %31 : vector<1x8x128xf32> to vector<8x128xf32>
    %c9 = arith.constant 9 : index
    %33 = arith.index_cast %5 : i32 to index
    %c0_15 = arith.constant 0 : index
    %34 = vector.load %arg2[%c9, %33, %c0_15] : memref<32x8x128xf32, #tpu.memory_space<vmem>>, vector<1x8x128xf32>
    %35 = vector.shape_cast %34 : vector<1x8x128xf32> to vector<8x128xf32>
    %c0_16 = arith.constant 0 : index
    %36 = arith.index_cast %5 : i32 to index
    %c0_17 = arith.constant 0 : index
    %37 = vector.load %arg3[%c0_16, %36, %c0_17] : memref<32x8x128xf32, #tpu.memory_space<vmem>>, vector<1x8x128xf32>
    %38 = vector.shape_cast %37 : vector<1x8x128xf32> to vector<8x128xf32>
    %c1_18 = arith.constant 1 : index
    %39 = arith.index_cast %5 : i32 to index
    %c0_19 = arith.constant 0 : index
    %40 = vector.load %arg3[%c1_18, %39, %c0_19] : memref<32x8x128xf32, #tpu.memory_space<vmem>>, vector<1x8x128xf32>
    %41 = vector.shape_cast %40 : vector<1x8x128xf32> to vector<8x128xf32>
    %c2_20 = arith.constant 2 : index
    %42 = arith.index_cast %5 : i32 to index
    %c0_21 = arith.constant 0 : index
    %43 = vector.load %arg3[%c2_20, %42, %c0_21] : memref<32x8x128xf32, #tpu.memory_space<vmem>>, vector<1x8x128xf32>
    %44 = vector.shape_cast %43 : vector<1x8x128xf32> to vector<8x128xf32>
    %c3_22 = arith.constant 3 : index
    %45 = arith.index_cast %5 : i32 to index
    %c0_23 = arith.constant 0 : index
    %46 = vector.load %arg3[%c3_22, %45, %c0_23] : memref<32x8x128xf32, #tpu.memory_space<vmem>>, vector<1x8x128xf32>
    %47 = vector.shape_cast %46 : vector<1x8x128xf32> to vector<8x128xf32>
    %c5_24 = arith.constant 5 : index
    %48 = arith.index_cast %5 : i32 to index
    %c0_25 = arith.constant 0 : index
    %49 = vector.load %arg3[%c5_24, %48, %c0_25] : memref<32x8x128xf32, #tpu.memory_space<vmem>>, vector<1x8x128xf32>
    %50 = vector.shape_cast %49 : vector<1x8x128xf32> to vector<8x128xf32>
    %c6_26 = arith.constant 6 : index
    %51 = arith.index_cast %5 : i32 to index
    %c0_27 = arith.constant 0 : index
    %52 = vector.load %arg3[%c6_26, %51, %c0_27] : memref<32x8x128xf32, #tpu.memory_space<vmem>>, vector<1x8x128xf32>
    %53 = vector.shape_cast %52 : vector<1x8x128xf32> to vector<8x128xf32>
    %c7_28 = arith.constant 7 : index
    %54 = arith.index_cast %5 : i32 to index
    %c0_29 = arith.constant 0 : index
    %55 = vector.load %arg3[%c7_28, %54, %c0_29] : memref<32x8x128xf32, #tpu.memory_space<vmem>>, vector<1x8x128xf32>
    %56 = vector.shape_cast %55 : vector<1x8x128xf32> to vector<8x128xf32>
    %c8_30 = arith.constant 8 : index
    %57 = arith.index_cast %5 : i32 to index
    %c0_31 = arith.constant 0 : index
    %58 = vector.load %arg3[%c8_30, %57, %c0_31] : memref<32x8x128xf32, #tpu.memory_space<vmem>>, vector<1x8x128xf32>
    %59 = vector.shape_cast %58 : vector<1x8x128xf32> to vector<8x128xf32>
    %c4_32 = arith.constant 4 : index
    %60 = arith.index_cast %5 : i32 to index
    %c0_33 = arith.constant 0 : index
    %61 = vector.load %arg3[%c4_32, %60, %c0_33] : memref<32x8x128xf32, #tpu.memory_space<vmem>>, vector<1x8x128xf32>
    %62 = vector.shape_cast %61 : vector<1x8x128xf32> to vector<8x128xf32>
    %c9_34 = arith.constant 9 : index
    %63 = arith.index_cast %5 : i32 to index
    %c0_35 = arith.constant 0 : index
    %64 = vector.load %arg3[%c9_34, %63, %c0_35] : memref<32x8x128xf32, #tpu.memory_space<vmem>>, vector<1x8x128xf32>
    %65 = vector.shape_cast %64 : vector<1x8x128xf32> to vector<8x128xf32>
    %cst_36 = arith.constant 0.000000e+00 : f32
    %66 = vector.broadcast %cst_36 : f32 to vector<8x128xf32>
    %67 = arith.cmpf ogt, %62, %66 : vector<8x128xf32>
    %cst_37 = arith.constant 0.000000e+00 : f32
    %68 = vector.broadcast %cst_37 : f32 to vector<8x128xf32>
    %69 = arith.cmpf oeq, %62, %68 : vector<8x128xf32>
    %cst_38 = arith.constant 0.000000e+00 : f32
    %70 = vector.broadcast %cst_38 : f32 to vector<8x128xf32>
    %71 = arith.subf %20, %62 : vector<8x128xf32>
    %72 = arith.mulf %71, %71 : vector<8x128xf32>
    %73 = arith.addf %70, %72 : vector<8x128xf32>
    %74 = arith.subf %35, %65 : vector<8x128xf32>
    %75 = arith.mulf %74, %74 : vector<8x128xf32>
    %76 = arith.addf %73, %75 : vector<8x128xf32>
    %cst_39 = arith.constant 0.000000e+00 : f32
    %77 = vector.broadcast %cst_39 : f32 to vector<8x128xf32>
    %c10 = arith.constant 10 : index
    %78 = arith.index_cast %5 : i32 to index
    %c0_40 = arith.constant 0 : index
    %79 = vector.load %arg2[%c10, %78, %c0_40] : memref<32x8x128xf32, #tpu.memory_space<vmem>>, vector<1x8x128xf32>
    %80 = vector.shape_cast %79 : vector<1x8x128xf32> to vector<8x128xf32>
    %c10_41 = arith.constant 10 : index
    %81 = arith.index_cast %5 : i32 to index
    %c0_42 = arith.constant 0 : index
    %82 = vector.load %arg3[%c10_41, %81, %c0_42] : memref<32x8x128xf32, #tpu.memory_space<vmem>>, vector<1x8x128xf32>
    %83 = vector.shape_cast %82 : vector<1x8x128xf32> to vector<8x128xf32>
    %84 = arith.subf %80, %83 : vector<8x128xf32>
    %85 = arith.mulf %84, %84 : vector<8x128xf32>
    %86 = arith.addf %77, %85 : vector<8x128xf32>
    %c11 = arith.constant 11 : index
    %87 = arith.index_cast %5 : i32 to index
    %c0_43 = arith.constant 0 : index
    %88 = vector.load %arg2[%c11, %87, %c0_43] : memref<32x8x128xf32, #tpu.memory_space<vmem>>, vector<1x8x128xf32>
    %89 = vector.shape_cast %88 : vector<1x8x128xf32> to vector<8x128xf32>
    %c11_44 = arith.constant 11 : index
    %90 = arith.index_cast %5 : i32 to index
    %c0_45 = arith.constant 0 : index
    %91 = vector.load %arg3[%c11_44, %90, %c0_45] : memref<32x8x128xf32, #tpu.memory_space<vmem>>, vector<1x8x128xf32>
    %92 = vector.shape_cast %91 : vector<1x8x128xf32> to vector<8x128xf32>
    %93 = arith.subf %89, %92 : vector<8x128xf32>
    %94 = arith.mulf %93, %93 : vector<8x128xf32>
    %95 = arith.addf %86, %94 : vector<8x128xf32>
    %c12 = arith.constant 12 : index
    %96 = arith.index_cast %5 : i32 to index
    %c0_46 = arith.constant 0 : index
    %97 = vector.load %arg2[%c12, %96, %c0_46] : memref<32x8x128xf32, #tpu.memory_space<vmem>>, vector<1x8x128xf32>
    %98 = vector.shape_cast %97 : vector<1x8x128xf32> to vector<8x128xf32>
    %c12_47 = arith.constant 12 : index
    %99 = arith.index_cast %5 : i32 to index
    %c0_48 = arith.constant 0 : index
    %100 = vector.load %arg3[%c12_47, %99, %c0_48] : memref<32x8x128xf32, #tpu.memory_space<vmem>>, vector<1x8x128xf32>
    %101 = vector.shape_cast %100 : vector<1x8x128xf32> to vector<8x128xf32>
    %102 = arith.subf %98, %101 : vector<8x128xf32>
    %103 = arith.mulf %102, %102 : vector<8x128xf32>
    %104 = arith.addf %95, %103 : vector<8x128xf32>
    %c13 = arith.constant 13 : index
    %105 = arith.index_cast %5 : i32 to index
    %c0_49 = arith.constant 0 : index
    %106 = vector.load %arg2[%c13, %105, %c0_49] : memref<32x8x128xf32, #tpu.memory_space<vmem>>, vector<1x8x128xf32>
    %107 = vector.shape_cast %106 : vector<1x8x128xf32> to vector<8x128xf32>
    %c13_50 = arith.constant 13 : index
    %108 = arith.index_cast %5 : i32 to index
    %c0_51 = arith.constant 0 : index
    %109 = vector.load %arg3[%c13_50, %108, %c0_51] : memref<32x8x128xf32, #tpu.memory_space<vmem>>, vector<1x8x128xf32>
    %110 = vector.shape_cast %109 : vector<1x8x128xf32> to vector<8x128xf32>
    %111 = arith.subf %107, %110 : vector<8x128xf32>
    %112 = arith.mulf %111, %111 : vector<8x128xf32>
    %113 = arith.addf %104, %112 : vector<8x128xf32>
    %c14 = arith.constant 14 : index
    %114 = arith.index_cast %5 : i32 to index
    %c0_52 = arith.constant 0 : index
    %115 = vector.load %arg2[%c14, %114, %c0_52] : memref<32x8x128xf32, #tpu.memory_space<vmem>>, vector<1x8x128xf32>
    %116 = vector.shape_cast %115 : vector<1x8x128xf32> to vector<8x128xf32>
    %c14_53 = arith.constant 14 : index
    %117 = arith.index_cast %5 : i32 to index
    %c0_54 = arith.constant 0 : index
    %118 = vector.load %arg3[%c14_53, %117, %c0_54] : memref<32x8x128xf32, #tpu.memory_space<vmem>>, vector<1x8x128xf32>
    %119 = vector.shape_cast %118 : vector<1x8x128xf32> to vector<8x128xf32>
    %120 = arith.subf %116, %119 : vector<8x128xf32>
    %121 = arith.mulf %120, %120 : vector<8x128xf32>
    %122 = arith.addf %113, %121 : vector<8x128xf32>
    %c15 = arith.constant 15 : index
    %123 = arith.index_cast %5 : i32 to index
    %c0_55 = arith.constant 0 : index
    %124 = vector.load %arg2[%c15, %123, %c0_55] : memref<32x8x128xf32, #tpu.memory_space<vmem>>, vector<1x8x128xf32>
    %125 = vector.shape_cast %124 : vector<1x8x128xf32> to vector<8x128xf32>
    %c15_56 = arith.constant 15 : index
    %126 = arith.index_cast %5 : i32 to index
    %c0_57 = arith.constant 0 : index
    %127 = vector.load %arg3[%c15_56, %126, %c0_57] : memref<32x8x128xf32, #tpu.memory_space<vmem>>, vector<1x8x128xf32>
    %128 = vector.shape_cast %127 : vector<1x8x128xf32> to vector<8x128xf32>
    %129 = arith.subf %125, %128 : vector<8x128xf32>
    %130 = arith.mulf %129, %129 : vector<8x128xf32>
    %131 = arith.addf %122, %130 : vector<8x128xf32>
    %c16 = arith.constant 16 : index
    %132 = arith.index_cast %5 : i32 to index
    %c0_58 = arith.constant 0 : index
    %133 = vector.load %arg2[%c16, %132, %c0_58] : memref<32x8x128xf32, #tpu.memory_space<vmem>>, vector<1x8x128xf32>
    %134 = vector.shape_cast %133 : vector<1x8x128xf32> to vector<8x128xf32>
    %c16_59 = arith.constant 16 : index
    %135 = arith.index_cast %5 : i32 to index
    %c0_60 = arith.constant 0 : index
    %136 = vector.load %arg3[%c16_59, %135, %c0_60] : memref<32x8x128xf32, #tpu.memory_space<vmem>>, vector<1x8x128xf32>
    %137 = vector.shape_cast %136 : vector<1x8x128xf32> to vector<8x128xf32>
    %138 = arith.subf %134, %137 : vector<8x128xf32>
    %139 = arith.mulf %138, %138 : vector<8x128xf32>
    %140 = arith.addf %131, %139 : vector<8x128xf32>
    %c17 = arith.constant 17 : index
    %141 = arith.index_cast %5 : i32 to index
    %c0_61 = arith.constant 0 : index
    %142 = vector.load %arg2[%c17, %141, %c0_61] : memref<32x8x128xf32, #tpu.memory_space<vmem>>, vector<1x8x128xf32>
    %143 = vector.shape_cast %142 : vector<1x8x128xf32> to vector<8x128xf32>
    %c17_62 = arith.constant 17 : index
    %144 = arith.index_cast %5 : i32 to index
    %c0_63 = arith.constant 0 : index
    %145 = vector.load %arg3[%c17_62, %144, %c0_63] : memref<32x8x128xf32, #tpu.memory_space<vmem>>, vector<1x8x128xf32>
    %146 = vector.shape_cast %145 : vector<1x8x128xf32> to vector<8x128xf32>
    %147 = arith.subf %143, %146 : vector<8x128xf32>
    %148 = arith.mulf %147, %147 : vector<8x128xf32>
    %149 = arith.addf %140, %148 : vector<8x128xf32>
    %c18 = arith.constant 18 : index
    %150 = arith.index_cast %5 : i32 to index
    %c0_64 = arith.constant 0 : index
    %151 = vector.load %arg2[%c18, %150, %c0_64] : memref<32x8x128xf32, #tpu.memory_space<vmem>>, vector<1x8x128xf32>
    %152 = vector.shape_cast %151 : vector<1x8x128xf32> to vector<8x128xf32>
    %c18_65 = arith.constant 18 : index
    %153 = arith.index_cast %5 : i32 to index
    %c0_66 = arith.constant 0 : index
    %154 = vector.load %arg3[%c18_65, %153, %c0_66] : memref<32x8x128xf32, #tpu.memory_space<vmem>>, vector<1x8x128xf32>
    %155 = vector.shape_cast %154 : vector<1x8x128xf32> to vector<8x128xf32>
    %156 = arith.subf %152, %155 : vector<8x128xf32>
    %157 = arith.mulf %156, %156 : vector<8x128xf32>
    %158 = arith.addf %149, %157 : vector<8x128xf32>
    %c19 = arith.constant 19 : index
    %159 = arith.index_cast %5 : i32 to index
    %c0_67 = arith.constant 0 : index
    %160 = vector.load %arg2[%c19, %159, %c0_67] : memref<32x8x128xf32, #tpu.memory_space<vmem>>, vector<1x8x128xf32>
    %161 = vector.shape_cast %160 : vector<1x8x128xf32> to vector<8x128xf32>
    %c19_68 = arith.constant 19 : index
    %162 = arith.index_cast %5 : i32 to index
    %c0_69 = arith.constant 0 : index
    %163 = vector.load %arg3[%c19_68, %162, %c0_69] : memref<32x8x128xf32, #tpu.memory_space<vmem>>, vector<1x8x128xf32>
    %164 = vector.shape_cast %163 : vector<1x8x128xf32> to vector<8x128xf32>
    %165 = arith.subf %161, %164 : vector<8x128xf32>
    %166 = arith.mulf %165, %165 : vector<8x128xf32>
    %167 = arith.addf %158, %166 : vector<8x128xf32>
    %c20 = arith.constant 20 : index
    %168 = arith.index_cast %5 : i32 to index
    %c0_70 = arith.constant 0 : index
    %169 = vector.load %arg2[%c20, %168, %c0_70] : memref<32x8x128xf32, #tpu.memory_space<vmem>>, vector<1x8x128xf32>
    %170 = vector.shape_cast %169 : vector<1x8x128xf32> to vector<8x128xf32>
    %c20_71 = arith.constant 20 : index
    %171 = arith.index_cast %5 : i32 to index
    %c0_72 = arith.constant 0 : index
    %172 = vector.load %arg3[%c20_71, %171, %c0_72] : memref<32x8x128xf32, #tpu.memory_space<vmem>>, vector<1x8x128xf32>
    %173 = vector.shape_cast %172 : vector<1x8x128xf32> to vector<8x128xf32>
    %174 = arith.subf %170, %173 : vector<8x128xf32>
    %175 = arith.mulf %174, %174 : vector<8x128xf32>
    %176 = arith.addf %167, %175 : vector<8x128xf32>
    %c21 = arith.constant 21 : index
    %177 = arith.index_cast %5 : i32 to index
    %c0_73 = arith.constant 0 : index
    %178 = vector.load %arg2[%c21, %177, %c0_73] : memref<32x8x128xf32, #tpu.memory_space<vmem>>, vector<1x8x128xf32>
    %179 = vector.shape_cast %178 : vector<1x8x128xf32> to vector<8x128xf32>
    %c21_74 = arith.constant 21 : index
    %180 = arith.index_cast %5 : i32 to index
    %c0_75 = arith.constant 0 : index
    %181 = vector.load %arg3[%c21_74, %180, %c0_75] : memref<32x8x128xf32, #tpu.memory_space<vmem>>, vector<1x8x128xf32>
    %182 = vector.shape_cast %181 : vector<1x8x128xf32> to vector<8x128xf32>
    %183 = arith.subf %179, %182 : vector<8x128xf32>
    %184 = arith.mulf %183, %183 : vector<8x128xf32>
    %185 = arith.addf %176, %184 : vector<8x128xf32>
    %c22 = arith.constant 22 : index
    %186 = arith.index_cast %5 : i32 to index
    %c0_76 = arith.constant 0 : index
    %187 = vector.load %arg2[%c22, %186, %c0_76] : memref<32x8x128xf32, #tpu.memory_space<vmem>>, vector<1x8x128xf32>
    %188 = vector.shape_cast %187 : vector<1x8x128xf32> to vector<8x128xf32>
    %c22_77 = arith.constant 22 : index
    %189 = arith.index_cast %5 : i32 to index
    %c0_78 = arith.constant 0 : index
    %190 = vector.load %arg3[%c22_77, %189, %c0_78] : memref<32x8x128xf32, #tpu.memory_space<vmem>>, vector<1x8x128xf32>
    %191 = vector.shape_cast %190 : vector<1x8x128xf32> to vector<8x128xf32>
    %192 = arith.subf %188, %191 : vector<8x128xf32>
    %193 = arith.mulf %192, %192 : vector<8x128xf32>
    %194 = arith.addf %185, %193 : vector<8x128xf32>
    %c23 = arith.constant 23 : index
    %195 = arith.index_cast %5 : i32 to index
    %c0_79 = arith.constant 0 : index
    %196 = vector.load %arg2[%c23, %195, %c0_79] : memref<32x8x128xf32, #tpu.memory_space<vmem>>, vector<1x8x128xf32>
    %197 = vector.shape_cast %196 : vector<1x8x128xf32> to vector<8x128xf32>
    %c23_80 = arith.constant 23 : index
    %198 = arith.index_cast %5 : i32 to index
    %c0_81 = arith.constant 0 : index
    %199 = vector.load %arg3[%c23_80, %198, %c0_81] : memref<32x8x128xf32, #tpu.memory_space<vmem>>, vector<1x8x128xf32>
    %200 = vector.shape_cast %199 : vector<1x8x128xf32> to vector<8x128xf32>
    %201 = arith.subf %197, %200 : vector<8x128xf32>
    %202 = arith.mulf %201, %201 : vector<8x128xf32>
    %203 = arith.addf %194, %202 : vector<8x128xf32>
    %c24 = arith.constant 24 : index
    %204 = arith.index_cast %5 : i32 to index
    %c0_82 = arith.constant 0 : index
    %205 = vector.load %arg2[%c24, %204, %c0_82] : memref<32x8x128xf32, #tpu.memory_space<vmem>>, vector<1x8x128xf32>
    %206 = vector.shape_cast %205 : vector<1x8x128xf32> to vector<8x128xf32>
    %c24_83 = arith.constant 24 : index
    %207 = arith.index_cast %5 : i32 to index
    %c0_84 = arith.constant 0 : index
    %208 = vector.load %arg3[%c24_83, %207, %c0_84] : memref<32x8x128xf32, #tpu.memory_space<vmem>>, vector<1x8x128xf32>
    %209 = vector.shape_cast %208 : vector<1x8x128xf32> to vector<8x128xf32>
    %210 = arith.subf %206, %209 : vector<8x128xf32>
    %211 = arith.mulf %210, %210 : vector<8x128xf32>
    %212 = arith.addf %203, %211 : vector<8x128xf32>
    %c25 = arith.constant 25 : index
    %213 = arith.index_cast %5 : i32 to index
    %c0_85 = arith.constant 0 : index
    %214 = vector.load %arg2[%c25, %213, %c0_85] : memref<32x8x128xf32, #tpu.memory_space<vmem>>, vector<1x8x128xf32>
    %215 = vector.shape_cast %214 : vector<1x8x128xf32> to vector<8x128xf32>
    %c25_86 = arith.constant 25 : index
    %216 = arith.index_cast %5 : i32 to index
    %c0_87 = arith.constant 0 : index
    %217 = vector.load %arg3[%c25_86, %216, %c0_87] : memref<32x8x128xf32, #tpu.memory_space<vmem>>, vector<1x8x128xf32>
    %218 = vector.shape_cast %217 : vector<1x8x128xf32> to vector<8x128xf32>
    %219 = arith.subf %215, %218 : vector<8x128xf32>
    %220 = arith.mulf %219, %219 : vector<8x128xf32>
    %221 = arith.addf %212, %220 : vector<8x128xf32>
    %c26 = arith.constant 26 : index
    %222 = arith.index_cast %5 : i32 to index
    %c0_88 = arith.constant 0 : index
    %223 = vector.load %arg2[%c26, %222, %c0_88] : memref<32x8x128xf32, #tpu.memory_space<vmem>>, vector<1x8x128xf32>
    %224 = vector.shape_cast %223 : vector<1x8x128xf32> to vector<8x128xf32>
    %c26_89 = arith.constant 26 : index
    %225 = arith.index_cast %5 : i32 to index
    %c0_90 = arith.constant 0 : index
    %226 = vector.load %arg3[%c26_89, %225, %c0_90] : memref<32x8x128xf32, #tpu.memory_space<vmem>>, vector<1x8x128xf32>
    %227 = vector.shape_cast %226 : vector<1x8x128xf32> to vector<8x128xf32>
    %228 = arith.subf %224, %227 : vector<8x128xf32>
    %229 = arith.mulf %228, %228 : vector<8x128xf32>
    %230 = arith.addf %221, %229 : vector<8x128xf32>
    %c27 = arith.constant 27 : index
    %231 = arith.index_cast %5 : i32 to index
    %c0_91 = arith.constant 0 : index
    %232 = vector.load %arg2[%c27, %231, %c0_91] : memref<32x8x128xf32, #tpu.memory_space<vmem>>, vector<1x8x128xf32>
    %233 = vector.shape_cast %232 : vector<1x8x128xf32> to vector<8x128xf32>
    %c27_92 = arith.constant 27 : index
    %234 = arith.index_cast %5 : i32 to index
    %c0_93 = arith.constant 0 : index
    %235 = vector.load %arg3[%c27_92, %234, %c0_93] : memref<32x8x128xf32, #tpu.memory_space<vmem>>, vector<1x8x128xf32>
    %236 = vector.shape_cast %235 : vector<1x8x128xf32> to vector<8x128xf32>
    %237 = arith.subf %233, %236 : vector<8x128xf32>
    %238 = arith.mulf %237, %237 : vector<8x128xf32>
    %239 = arith.addf %230, %238 : vector<8x128xf32>
    %c28 = arith.constant 28 : index
    %240 = arith.index_cast %5 : i32 to index
    %c0_94 = arith.constant 0 : index
    %241 = vector.load %arg2[%c28, %240, %c0_94] : memref<32x8x128xf32, #tpu.memory_space<vmem>>, vector<1x8x128xf32>
    %242 = vector.shape_cast %241 : vector<1x8x128xf32> to vector<8x128xf32>
    %c28_95 = arith.constant 28 : index
    %243 = arith.index_cast %5 : i32 to index
    %c0_96 = arith.constant 0 : index
    %244 = vector.load %arg3[%c28_95, %243, %c0_96] : memref<32x8x128xf32, #tpu.memory_space<vmem>>, vector<1x8x128xf32>
    %245 = vector.shape_cast %244 : vector<1x8x128xf32> to vector<8x128xf32>
    %246 = arith.subf %242, %245 : vector<8x128xf32>
    %247 = arith.mulf %246, %246 : vector<8x128xf32>
    %248 = arith.addf %239, %247 : vector<8x128xf32>
    %c29 = arith.constant 29 : index
    %249 = arith.index_cast %5 : i32 to index
    %c0_97 = arith.constant 0 : index
    %250 = vector.load %arg2[%c29, %249, %c0_97] : memref<32x8x128xf32, #tpu.memory_space<vmem>>, vector<1x8x128xf32>
    %251 = vector.shape_cast %250 : vector<1x8x128xf32> to vector<8x128xf32>
    %c29_98 = arith.constant 29 : index
    %252 = arith.index_cast %5 : i32 to index
    %c0_99 = arith.constant 0 : index
    %253 = vector.load %arg3[%c29_98, %252, %c0_99] : memref<32x8x128xf32, #tpu.memory_space<vmem>>, vector<1x8x128xf32>
    %254 = vector.shape_cast %253 : vector<1x8x128xf32> to vector<8x128xf32>
    %255 = arith.subf %251, %254 : vector<8x128xf32>
    %256 = arith.mulf %255, %255 : vector<8x128xf32>
    %257 = arith.addf %248, %256 : vector<8x128xf32>
    %258 = vector.broadcast %cst_1 : f32 to vector<8x128xf32>
    %259 = arith.mulf %38, %258 : vector<8x128xf32>
    %260 = vector.broadcast %cst_1 : f32 to vector<8x128xf32>
    %261 = arith.mulf %41, %260 : vector<8x128xf32>
    %262 = vector.broadcast %cst_2 : f32 to vector<8x128xf32>
    %263 = arith.mulf %262, %44 : vector<8x128xf32>
    %264 = arith.subf %259, %263 : vector<8x128xf32>
    %265 = vector.broadcast %cst_2 : f32 to vector<8x128xf32>
    %266 = arith.mulf %265, %44 : vector<8x128xf32>
    %267 = arith.addf %259, %266 : vector<8x128xf32>
    %268 = vector.broadcast %cst_2 : f32 to vector<8x128xf32>
    %269 = arith.mulf %268, %47 : vector<8x128xf32>
    %270 = arith.subf %261, %269 : vector<8x128xf32>
    %271 = vector.broadcast %cst_2 : f32 to vector<8x128xf32>
    %272 = arith.mulf %271, %47 : vector<8x128xf32>
    %273 = arith.addf %261, %272 : vector<8x128xf32>
    %274 = arith.mulf %44, %47 : vector<8x128xf32>
    %275 = vector.broadcast %cst_1 : f32 to vector<8x128xf32>
    %276 = arith.mulf %8, %275 : vector<8x128xf32>
    %277 = vector.broadcast %cst_1 : f32 to vector<8x128xf32>
    %278 = arith.mulf %11, %277 : vector<8x128xf32>
    %279 = vector.broadcast %cst_2 : f32 to vector<8x128xf32>
    %280 = arith.mulf %279, %14 : vector<8x128xf32>
    %281 = vector.broadcast %cst_2 : f32 to vector<8x128xf32>
    %282 = arith.mulf %281, %17 : vector<8x128xf32>
    %283 = arith.addf %276, %280 : vector<8x128xf32>
    %284 = arith.minimumf %283, %267 : vector<8x128xf32>
    %285 = arith.subf %276, %280 : vector<8x128xf32>
    %286 = arith.maximumf %285, %264 : vector<8x128xf32>
    %287 = arith.subf %284, %286 : vector<8x128xf32>
    %cst_100 = arith.constant 0.000000e+00 : f32
    %288 = vector.broadcast %cst_100 : f32 to vector<8x128xf32>
    %289 = arith.maximumf %287, %288 : vector<8x128xf32>
    %290 = arith.addf %278, %282 : vector<8x128xf32>
    %291 = arith.minimumf %290, %273 : vector<8x128xf32>
    %292 = arith.subf %278, %282 : vector<8x128xf32>
    %293 = arith.maximumf %292, %270 : vector<8x128xf32>
    %294 = arith.subf %291, %293 : vector<8x128xf32>
    %cst_101 = arith.constant 0.000000e+00 : f32
    %295 = vector.broadcast %cst_101 : f32 to vector<8x128xf32>
    %296 = arith.maximumf %294, %295 : vector<8x128xf32>
    %297 = arith.mulf %289, %296 : vector<8x128xf32>
    %298 = arith.mulf %14, %17 : vector<8x128xf32>
    %299 = arith.addf %298, %274 : vector<8x128xf32>
    %300 = arith.subf %299, %297 : vector<8x128xf32>
    %301 = vector.broadcast %cst_1 : f32 to vector<8x128xf32>
    %302 = arith.mulf %23, %301 : vector<8x128xf32>
    %303 = vector.broadcast %cst_1 : f32 to vector<8x128xf32>
    %304 = arith.mulf %26, %303 : vector<8x128xf32>
    %305 = vector.broadcast %cst_2 : f32 to vector<8x128xf32>
    %306 = arith.mulf %305, %29 : vector<8x128xf32>
    %307 = vector.broadcast %cst_2 : f32 to vector<8x128xf32>
    %308 = arith.mulf %307, %32 : vector<8x128xf32>
    %309 = arith.addf %302, %306 : vector<8x128xf32>
    %310 = arith.minimumf %309, %267 : vector<8x128xf32>
    %311 = arith.subf %302, %306 : vector<8x128xf32>
    %312 = arith.maximumf %311, %264 : vector<8x128xf32>
    %313 = arith.subf %310, %312 : vector<8x128xf32>
    %cst_102 = arith.constant 0.000000e+00 : f32
    %314 = vector.broadcast %cst_102 : f32 to vector<8x128xf32>
    %315 = arith.maximumf %313, %314 : vector<8x128xf32>
    %316 = arith.addf %304, %308 : vector<8x128xf32>
    %317 = arith.minimumf %316, %273 : vector<8x128xf32>
    %318 = arith.subf %304, %308 : vector<8x128xf32>
    %319 = arith.maximumf %318, %270 : vector<8x128xf32>
    %320 = arith.subf %317, %319 : vector<8x128xf32>
    %cst_103 = arith.constant 0.000000e+00 : f32
    %321 = vector.broadcast %cst_103 : f32 to vector<8x128xf32>
    %322 = arith.maximumf %320, %321 : vector<8x128xf32>
    %323 = arith.mulf %315, %322 : vector<8x128xf32>
    %324 = arith.mulf %29, %32 : vector<8x128xf32>
    %325 = arith.addf %324, %274 : vector<8x128xf32>
    %326 = arith.subf %325, %323 : vector<8x128xf32>
    %327 = arith.mulf %323, %300 : vector<8x128xf32>
    %328 = arith.mulf %297, %326 : vector<8x128xf32>
    %329 = arith.cmpf ogt, %327, %328 : vector<8x128xf32>
    %330 = arith.select %329, %323, %297 : vector<8x128xi1>, vector<8x128xf32>
    %331 = arith.select %329, %326, %300 : vector<8x128xi1>, vector<8x128xf32>
    %332 = arith.select %329, %23, %8 : vector<8x128xi1>, vector<8x128xf32>
    %333 = arith.select %329, %26, %11 : vector<8x128xi1>, vector<8x128xf32>
    %334 = arith.select %329, %29, %14 : vector<8x128xi1>, vector<8x128xf32>
    %335 = arith.select %329, %32, %17 : vector<8x128xi1>, vector<8x128xf32>
    %336 = arith.select %329, %35, %20 : vector<8x128xi1>, vector<8x128xf32>
    %337 = arith.select %329, %50, %38 : vector<8x128xi1>, vector<8x128xf32>
    %338 = arith.select %329, %53, %41 : vector<8x128xi1>, vector<8x128xf32>
    %339 = arith.select %329, %56, %44 : vector<8x128xi1>, vector<8x128xf32>
    %340 = arith.select %329, %59, %47 : vector<8x128xi1>, vector<8x128xf32>
    %341 = arith.divf %330, %331 : vector<8x128xf32>
    %342 = arith.subf %332, %337 : vector<8x128xf32>
    %343 = arith.subf %333, %338 : vector<8x128xf32>
    %344 = arith.mulf %342, %342 : vector<8x128xf32>
    %345 = arith.mulf %343, %343 : vector<8x128xf32>
    %346 = arith.addf %344, %345 : vector<8x128xf32>
    %cst_104 = arith.constant 0.000000e+00 : f32
    %347 = vector.broadcast %cst_104 : f32 to vector<8x128xf32>
    %348 = arith.maximumf %334, %347 : vector<8x128xf32>
    %349 = math.sqrt %348 : vector<8x128xf32>
    %cst_105 = arith.constant 0.000000e+00 : f32
    %350 = vector.broadcast %cst_105 : f32 to vector<8x128xf32>
    %351 = arith.maximumf %339, %350 : vector<8x128xf32>
    %352 = math.sqrt %351 : vector<8x128xf32>
    %353 = arith.subf %349, %352 : vector<8x128xf32>
    %cst_106 = arith.constant 0.000000e+00 : f32
    %354 = vector.broadcast %cst_106 : f32 to vector<8x128xf32>
    %355 = arith.maximumf %335, %354 : vector<8x128xf32>
    %356 = math.sqrt %355 : vector<8x128xf32>
    %cst_107 = arith.constant 0.000000e+00 : f32
    %357 = vector.broadcast %cst_107 : f32 to vector<8x128xf32>
    %358 = arith.maximumf %340, %357 : vector<8x128xf32>
    %359 = math.sqrt %358 : vector<8x128xf32>
    %360 = arith.subf %356, %359 : vector<8x128xf32>
    %361 = arith.mulf %353, %353 : vector<8x128xf32>
    %362 = arith.mulf %360, %360 : vector<8x128xf32>
    %363 = arith.addf %361, %362 : vector<8x128xf32>
    %364 = arith.subf %336, %341 : vector<8x128xf32>
    %365 = arith.mulf %364, %364 : vector<8x128xf32>
    %366 = arith.addf %346, %363 : vector<8x128xf32>
    %367 = vector.broadcast %cst_3 : f32 to vector<8x128xf32>
    %368 = arith.mulf %367, %366 : vector<8x128xf32>
    %369 = arith.addf %368, %365 : vector<8x128xf32>
    %370 = arith.addf %369, %257 : vector<8x128xf32>
    %cst_108 = arith.constant 0.000000e+00 : f32
    %371 = vector.broadcast %cst_108 : f32 to vector<8x128xf32>
    %372 = arith.select %67, %370, %371 : vector<8x128xi1>, vector<8x128xf32>
    %373 = vector.broadcast %cst_4 : f32 to vector<8x128xf32>
    %374 = arith.mulf %373, %76 : vector<8x128xf32>
    %cst_109 = arith.constant 0.000000e+00 : f32
    %375 = vector.broadcast %cst_109 : f32 to vector<8x128xf32>
    %376 = arith.select %69, %374, %375 : vector<8x128xi1>, vector<8x128xf32>
    %377 = arith.addf %372, %376 : vector<8x128xf32>
    %378 = arith.addf %3, %377 : vector<8x128xf32>
    %c1_i32 = arith.constant 1 : i32
    %c0_110 = arith.constant 0 : index
    %c0_111 = arith.constant 0 : index
    %379 = vector.load %arg5[%c0_110, %c0_111] : memref<8x128xf32, #tpu.memory_space<vmem>>, vector<8x128xf32>
    %380 = arith.addf %379, %378 : vector<8x128xf32>
    %c0_112 = arith.constant 0 : index
    %c0_113 = arith.constant 0 : index
    %381 = vector.load %arg5[%c0_112, %c0_113] : memref<8x128xf32, #tpu.memory_space<vmem>>, vector<8x128xf32>
    tpu.vector_store %arg5[%c0_112, %c0_113], %380 {strides = array<i32>} : memref<8x128xf32, #tpu.memory_space<vmem>>, vector<8x128xf32>,
    %c0_i32_114 = arith.constant 0 : i32
    %382 = arith.cmpi eq, %arg1, %c0_i32_114 : i32
    %383 = arith.extui %382 : i1 to i32
    %c0_i32_115 = arith.constant 0 : i32
    %384 = arith.cmpi ne, %383, %c0_i32_115 : i32
    scf.if %384 {
      %c0_116 = arith.constant 0 : index
      %c0_117 = arith.constant 0 : index
      %385 = vector.load %arg5[%c0_116, %c0_117] : memref<8x128xf32, #tpu.memory_space<vmem>>, vector<8x128xf32>
      %386 = vector.shape_cast %385 : vector<8x128xf32> to vector<1x8x128xf32>
      %cst_118 = arith.constant dense<0.000000e+00> : vector<1xf32>
      %387 = vector.multi_reduction <add>, %386, %cst_118 [1, 2] : vector<1x8x128xf32> to vector<1xf32>
      %388 = vector.shape_cast %387 : vector<1xf32> to vector<1x1x1xf32>
      %389 = vector.extract %388[0, 0, 0] : f32 from vector<1x1x1xf32>
      %c0_119 = arith.constant 0 : index
      %c0_120 = arith.constant 0 : index
      %390 = memref.load %arg4[%c0_119, %c0_120] : memref<1x1xf32, #tpu.memory_space<smem>>
      memref.store %389, %arg4[%c0_119, %c0_120] : memref<1x1xf32, #tpu.memory_space<smem>>
    } else {
    }
    return
  }
  func.func @transform_0(%arg0: i32, %arg1: i32) -> (i32, i32, i32) {
    %c1_i32 = arith.constant 1 : i32
    %0 = arith.muli %arg0, %c1_i32 : i32
    %1 = arith.addi %0, %arg1 : i32
    %c0_i32 = arith.constant 0 : i32
    %c0_i32_0 = arith.constant 0 : i32
    %c0_i32_1 = arith.constant 0 : i32
    return %c0_i32, %1, %c0_i32_0 : i32, i32, i32
  }
  func.func @transform_1(%arg0: i32, %arg1: i32) -> (i32, i32, i32) {
    %c1_i32 = arith.constant 1 : i32
    %0 = arith.muli %arg0, %c1_i32 : i32
    %1 = arith.addi %0, %arg1 : i32
    %c0_i32 = arith.constant 0 : i32
    %c0_i32_0 = arith.constant 0 : i32
    %c0_i32_1 = arith.constant 0 : i32
    return %c0_i32, %1, %c0_i32_0 : i32, i32, i32
  }
  func.func @transform_2(%arg0: i32, %arg1: i32) -> (i32, i32) {
    %c0_i32 = arith.constant 0 : i32
    %c0_i32_0 = arith.constant 0 : i32
    return %arg0, %c0_i32 : i32, i32
  }
}

</mosaic_0001>

<llo_original>
// kernel: detect_loss_pallas.1
$region0: #{detect_loss_pallas.1}
  #allocation0 [shape = 'u32[]', space=smem, size = 0x4, offset = 0x4, fixed_abs, tag = 'smem constant byte address 0x4 - core index']
  #allocation1 [shape = 'u32[144,128]{1,0:T(1,128)}', space=vmem, size = 0x12000, scoped, tag = 'internal scratch']
  #allocation2 [shape = 'f32[8,128]{1,0:T(8,128)}', space=vmem, size = 0x1000, scoped, tag = 'scratch operand']
  %s0 = inlined_call_operand.vmem [shape: f32[32,8,128], index: 0, kind: input, shape index: {}]
  %s1 = inlined_call_operand.vmem [shape: f32[32,8,128], index: 1, kind: input, shape index: {}]
  %s2 = inlined_call_operand.hbm [shape: f32[1,1], index: 2, kind: output, shape index: {}]
  %s3 = sld [smem:[#allocation0]]
  $region26: #{detect_loss_pallas.1} parent=0
    _
  %s5 = ssub.s32 1, %s3
  %s6 = scalar_select 0, %s5, %s3
  $region1: #{detect_loss_pallas.1} parent=0
    #allocation3 [shape = 'u8[512]{0}', space=smem, size = 0x200, scoped, tag = 'output window, operand 0, single buffered']
    #allocation4 [shape = 's32[1]{0}', space=sflag, size = 0x4, scoped, tag = 'scoped memory for detect_loss_pallas.1']
    %7 = vsyncpa [#allocation4], 0
    // Predicated region
    $region2: #{detect_loss_pallas.1} parent=1 // pred_check
      _
    $region3: #{detect_loss_pallas.1} parent=1 // pred_check_branch
      %9 = sbr.rel (0) target = $region5
    $region4: #{detect_loss_pallas.1} parent=1 // pred_region
      %s10 = sadd.s32 0, 0
      %p11 = scmp.lt.s32.totalorder %s10, 0
      %s12 = scalar_select %p11, %s10, 0
      %s13 = smul.addr %s12, 8
      %s14 = scalar_lea.vmem %s0, %s13
      %s15 = sadd.s32 0, 0
    $region5: #{detect_loss_pallas.1} parent=1 // pred_fallthru
      _
    // Predicated region
    $region6: #{detect_loss_pallas.1} parent=1 // pred_check
      _
    $region7: #{detect_loss_pallas.1} parent=1 // pred_check_branch
      %17 = sbr.rel (0) target = $region9
    $region8: #{detect_loss_pallas.1} parent=1 // pred_region
      %s18 = sadd.s32 0, 0
      %p19 = scmp.lt.s32.totalorder %s18, 0
      %s20 = scalar_select %p19, %s18, 0
      %s21 = smul.addr %s20, 8
      %s22 = scalar_lea.vmem %s1, %s21
      %s23 = sadd.s32 0, 0
    $region9: #{detect_loss_pallas.1} parent=1 // pred_fallthru
      _
    %s24 = sadd.s32 0, 0
    %p25 = scmp.lt.s32.totalorder %s24, 0
    %s26 = scalar_select %p25, %s24, 0
    %s27 = smul.addr %s26, 8
    %s28 = scalar_lea.vmem %s0, %s27
    %s29 = sadd.s32 0, 0
    %p30 = scmp.lt.s32.totalorder %s29, 0
    %s31 = scalar_select %p30, %s29, 0
    %s32 = smul.addr %s31, 8
    %s33 = scalar_lea.vmem %s1, %s32
    %s34 = sadd.s32 0, 0
    %p35 = scmp.lt.s32.totalorder %s34, 0
    %s36 = scalar_select %p35, %s34, 0
    %s37 = smul.addr %s36, 8
    %s38 = scalar_lea.vmem %s0, %s37
    %s39 = sadd.s32 0, 0
    %s40 = sadd.s32 0, 0
    %p41 = scmp.lt.s32.totalorder %s40, 0
    %s42 = scalar_select %p41, %s40, 0
    %s43 = smul.addr %s42, 8
    %s44 = scalar_lea.vmem %s1, %s43
    %s45 = sadd.s32 0, 0
    %p46 = scmp.eq.s32.totalorder 0, 0
    // Predicated region
    $region10: #{detect_loss_pallas.1} parent=1 // pred_check
      %p47 = pneg %p46
    $region11: #{detect_loss_pallas.1} parent=1 // pred_check_branch
      %49 = sbr.rel (%p47) target = $region13
    $region12: #{detect_loss_pallas.1} parent=1 // pred_region
      %50 = vst [vmem:[#allocation2] sm:$0xff] 0.0
    $region13: #{detect_loss_pallas.1} parent=1 // pred_fallthru
      _
    %v51 = vld [vmem:[%s38] sm:$0xff]
    %s52 = sadd.s32 0, 8
    %s53 = scalar_lea.vmem %s38, %s52
    %v54 = vld [vmem:[%s53] sm:$0xff]
    %s55 = sadd.s32 0, 16
    %s56 = scalar_lea.vmem %s38, %s55
    %v57 = vld [vmem:[%s56] sm:$0xff]
    %s58 = sadd.s32 0, 24
    %s59 = scalar_lea.vmem %s38, %s58
    %v60 = vld [vmem:[%s59] sm:$0xff]
    %s61 = sadd.s32 0, 32
    %s62 = scalar_lea.vmem %s38, %s61
    %v63 = vld [vmem:[%s62] sm:$0xff]
    %s64 = sadd.s32 0, 40
    %s65 = scalar_lea.vmem %s38, %s64
    %v66 = vld [vmem:[%s65] sm:$0xff]
    %s67 = sadd.s32 0, 48
    %s68 = scalar_lea.vmem %s38, %s67
    %v69 = vld [vmem:[%s68] sm:$0xff]
    %s70 = sadd.s32 0, 56
    %s71 = scalar_lea.vmem %s38, %s70
    %v72 = vld [vmem:[%s71] sm:$0xff]
    %s73 = sadd.s32 0, 64
    %s74 = scalar_lea.vmem %s38, %s73
    %v75 = vld [vmem:[%s74] sm:$0xff]
    %s76 = sadd.s32 0, 72
    %s77 = scalar_lea.vmem %s38, %s76
    %v78 = vld [vmem:[%s77] sm:$0xff]
    %v79 = vld [vmem:[%s44] sm:$0xff]
    %s80 = scalar_lea.vmem %s44, %s52
    %v81 = vld [vmem:[%s80] sm:$0xff]
    %s82 = scalar_lea.vmem %s44, %s55
    %v83 = vld [vmem:[%s82] sm:$0xff]
    %s84 = scalar_lea.vmem %s44, %s58
    %v85 = vld [vmem:[%s84] sm:$0xff]
    %s86 = scalar_lea.vmem %s44, %s64
    %v87 = vld [vmem:[%s86] sm:$0xff]
    %s88 = scalar_lea.vmem %s44, %s67
    %v89 = vld [vmem:[%s88] sm:$0xff]
    %s90 = scalar_lea.vmem %s44, %s70
    %v91 = vld [vmem:[%s90] sm:$0xff]
    %s92 = scalar_lea.vmem %s44, %s73
    %v93 = vld [vmem:[%s92] sm:$0xff]
    %s94 = scalar_lea.vmem %s44, %s61
    %v95 = vld [vmem:[%s94] sm:$0xff]
    %s96 = scalar_lea.vmem %s44, %s76
    %v97 = vld [vmem:[%s96] sm:$0xff]
    %vm98 = vcmp.gt.f32.partialorder %v95, 0.0
    %vm99 = vcmp.eq.f32.partialorder %v95, 0.0
    %v100 = vsub.f32 %v63, %v95
    %v101 = vmul.f32 %v100, %v100
    %v102 = vadd.f32 %v101, 0.0
    %v103 = vsub.f32 %v78, %v97
    %v104 = vmul.f32 %v103, %v103
    %v105 = vadd.f32 %v102, %v104
    %s106 = sadd.s32 0, 80
    %s107 = scalar_lea.vmem %s38, %s106
    %v108 = vld [vmem:[%s107] sm:$0xff]
    %s109 = scalar_lea.vmem %s44, %s106
    %v110 = vld [vmem:[%s109] sm:$0xff]
    %v111 = vsub.f32 %v108, %v110
    %v112 = vmul.f32 %v111, %v111
    %v113 = vadd.f32 %v112, 0.0
    %s114 = sadd.s32 0, 88
    %s115 = scalar_lea.vmem %s38, %s114
    %v116 = vld [vmem:[%s115] sm:$0xff]
    %s117 = scalar_lea.vmem %s44, %s114
    %v118 = vld [vmem:[%s117] sm:$0xff]
    %v119 = vsub.f32 %v116, %v118
    %v120 = vmul.f32 %v119, %v119
    %v121 = vadd.f32 %v113, %v120
    %s122 = sadd.s32 0, 96
    %s123 = scalar_lea.vmem %s38, %s122
    %v124 = vld [vmem:[%s123] sm:$0xff]
    %s125 = scalar_lea.vmem %s44, %s122
    %v126 = vld [vmem:[%s125] sm:$0xff]
    %v127 = vsub.f32 %v124, %v126
    %v128 = vmul.f32 %v127, %v127
    %v129 = vadd.f32 %v121, %v128
    %s130 = sadd.s32 0, 104
    %s131 = scalar_lea.vmem %s38, %s130
    %v132 = vld [vmem:[%s131] sm:$0xff]
    %s133 = scalar_lea.vmem %s44, %s130
    %v134 = vld [vmem:[%s133] sm:$0xff]
    %v135 = vsub.f32 %v132, %v134
    %v136 = vmul.f32 %v135, %v135
    %v137 = vadd.f32 %v129, %v136
    %s138 = sadd.s32 0, 112
    %s139 = scalar_lea.vmem %s38, %s138
    %v140 = vld [vmem:[%s139] sm:$0xff]
    %s141 = scalar_lea.vmem %s44, %s138
    %v142 = vld [vmem:[%s141] sm:$0xff]
    %v143 = vsub.f32 %v140, %v142
    %v144 = vmul.f32 %v143, %v143
    %v145 = vadd.f32 %v137, %v144
    %s146 = sadd.s32 0, 120
    %s147 = scalar_lea.vmem %s38, %s146
    %v148 = vld [vmem:[%s147] sm:$0xff]
    %s149 = scalar_lea.vmem %s44, %s146
    %v150 = vld [vmem:[%s149] sm:$0xff]
    %v151 = vsub.f32 %v148, %v150
    %v152 = vmul.f32 %v151, %v151
    %v153 = vadd.f32 %v145, %v152
    %s154 = sadd.s32 0, 128
    %s155 = scalar_lea.vmem %s38, %s154
    %v156 = vld [vmem:[%s155] sm:$0xff]
    %s157 = scalar_lea.vmem %s44, %s154
    %v158 = vld [vmem:[%s157] sm:$0xff]
    %v159 = vsub.f32 %v156, %v158
    %v160 = vmul.f32 %v159, %v159
    %v161 = vadd.f32 %v153, %v160
    %s162 = sadd.s32 0, 136
    %s163 = scalar_lea.vmem %s38, %s162
    %v164 = vld [vmem:[%s163] sm:$0xff]
    %s165 = scalar_lea.vmem %s44, %s162
    %v166 = vld [vmem:[%s165] sm:$0xff]
    %v167 = vsub.f32 %v164, %v166
    %v168 = vmul.f32 %v167, %v167
    %v169 = vadd.f32 %v161, %v168
    %s170 = sadd.s32 0, 144
    %s171 = scalar_lea.vmem %s38, %s170
    %v172 = vld [vmem:[%s171] sm:$0xff]
    %s173 = scalar_lea.vmem %s44, %s170
    %v174 = vld [vmem:[%s173] sm:$0xff]
    %v175 = vsub.f32 %v172, %v174
    %v176 = vmul.f32 %v175, %v175
    %v177 = vadd.f32 %v169, %v176
    %s178 = sadd.s32 0, 152
    %s179 = scalar_lea.vmem %s38, %s178
    %v180 = vld [vmem:[%s179] sm:$0xff]
    %s181 = scalar_lea.vmem %s44, %s178
    %v182 = vld [vmem:[%s181] sm:$0xff]
    %v183 = vsub.f32 %v180, %v182
    %v184 = vmul.f32 %v183, %v183
    %v185 = vadd.f32 %v177, %v184
    %s186 = sadd.s32 0, 160
    %s187 = scalar_lea.vmem %s38, %s186
    %v188 = vld [vmem:[%s187] sm:$0xff]
    %s189 = scalar_lea.vmem %s44, %s186
    %v190 = vld [vmem:[%s189] sm:$0xff]
    %v191 = vsub.f32 %v188, %v190
    %v192 = vmul.f32 %v191, %v191
    %v193 = vadd.f32 %v185, %v192
    %s194 = sadd.s32 0, 168
    %s195 = scalar_lea.vmem %s38, %s194
    %v196 = vld [vmem:[%s195] sm:$0xff]
    %s197 = scalar_lea.vmem %s44, %s194
    %v198 = vld [vmem:[%s197] sm:$0xff]
    %v199 = vsub.f32 %v196, %v198
    %v200 = vmul.f32 %v199, %v199
    %v201 = vadd.f32 %v193, %v200
    %s202 = sadd.s32 0, 176
    %s203 = scalar_lea.vmem %s38, %s202
    %v204 = vld [vmem:[%s203] sm:$0xff]
    %s205 = scalar_lea.vmem %s44, %s202
    %v206 = vld [vmem:[%s205] sm:$0xff]
    %v207 = vsub.f32 %v204, %v206
    %v208 = vmul.f32 %v207, %v207
    %v209 = vadd.f32 %v201, %v208
    %s210 = sadd.s32 0, 184
    %s211 = scalar_lea.vmem %s38, %s210
    %v212 = vld [vmem:[%s211] sm:$0xff]
    %s213 = scalar_lea.vmem %s44, %s210
    %v214 = vld [vmem:[%s213] sm:$0xff]
    %v215 = vsub.f32 %v212, %v214
    %v216 = vmul.f32 %v215, %v215
    %v217 = vadd.f32 %v209, %v216
    %s218 = sadd.s32 0, 192
    %s219 = scalar_lea.vmem %s38, %s218
    %v220 = vld [vmem:[%s219] sm:$0xff]
    %s221 = scalar_lea.vmem %s44, %s218
    %v222 = vld [vmem:[%s221] sm:$0xff]
    %v223 = vsub.f32 %v220, %v222
    %v224 = vmul.f32 %v223, %v223
    %v225 = vadd.f32 %v217, %v224
    %s226 = sadd.s32 0, 200
    %s227 = scalar_lea.vmem %s38, %s226
    %v228 = vld [vmem:[%s227] sm:$0xff]
    %s229 = scalar_lea.vmem %s44, %s226
    %v230 = vld [vmem:[%s229] sm:$0xff]
    %v231 = vsub.f32 %v228, %v230
    %v232 = vmul.f32 %v231, %v231
    %v233 = vadd.f32 %v225, %v232
    %s234 = sadd.s32 0, 208
    %s235 = scalar_lea.vmem %s38, %s234
    %v236 = vld [vmem:[%s235] sm:$0xff]
    %s237 = scalar_lea.vmem %s44, %s234
    %v238 = vld [vmem:[%s237] sm:$0xff]
    %v239 = vsub.f32 %v236, %v238
    %v240 = vmul.f32 %v239, %v239
    %v241 = vadd.f32 %v233, %v240
    %s242 = sadd.s32 0, 216
    %s243 = scalar_lea.vmem %s38, %s242
    %v244 = vld [vmem:[%s243] sm:$0xff]
    %s245 = scalar_lea.vmem %s44, %s242
    %v246 = vld [vmem:[%s245] sm:$0xff]
    %v247 = vsub.f32 %v244, %v246
    %v248 = vmul.f32 %v247, %v247
    %v249 = vadd.f32 %v241, %v248
    %s250 = sadd.s32 0, 224
    %s251 = scalar_lea.vmem %s38, %s250
    %v252 = vld [vmem:[%s251] sm:$0xff]
    %s253 = scalar_lea.vmem %s44, %s250
    %v254 = vld [vmem:[%s253] sm:$0xff]
    %v255 = vsub.f32 %v252, %v254
    %v256 = vmul.f32 %v255, %v255
    %v257 = vadd.f32 %v249, %v256
    %s258 = sadd.s32 0, 232
    %s259 = scalar_lea.vmem %s38, %s258
    %v260 = vld [vmem:[%s259] sm:$0xff]
    %s261 = scalar_lea.vmem %s44, %s258
    %v262 = vld [vmem:[%s261] sm:$0xff]
    %v263 = vsub.f32 %v260, %v262
    %v264 = vmul.f32 %v263, %v263
    %v265 = vadd.f32 %v257, %v264
    %v266 = vmul.f32 %v79, 0.14285715
    %v267 = vmul.f32 %v81, 0.14285715
    %v268 = vmul.f32 %v83, 0.5
    %v269 = vsub.f32 %v266, %v268
    %v270 = vadd.f32 %v266, %v268
    %v271 = vmul.f32 %v85, 0.5
    %v272 = vsub.f32 %v267, %v271
    %v273 = vadd.f32 %v267, %v271
    %v274 = vmul.f32 %v83, %v85
    %v275 = vmul.f32 %v51, 0.14285715
    %v276 = vmul.f32 %v54, 0.14285715
    %v277 = vmul.f32 %v57, 0.5
    %v278 = vmul.f32 %v60, 0.5
    %v279 = vadd.f32 %v275, %v277
    %v280 = vmin.f32 %v279, %v270
    %v281 = vsub.f32 %v275, %v277
    %v282 = vmax.f32 %v281, %v269
    %v283 = vsub.f32 %v280, %v282
    %v284 = vmax.f32 %v283, 0.0
    %v285 = vadd.f32 %v276, %v278
    %v286 = vmin.f32 %v285, %v273
    %v287 = vsub.f32 %v276, %v278
    %v288 = vmax.f32 %v287, %v272
    %v289 = vsub.f32 %v286, %v288
    %v290 = vmax.f32 %v289, 0.0
    %v291 = vmul.f32 %v284, %v290
    %v292 = vmul.f32 %v57, %v60
    %v293 = vadd.f32 %v292, %v274
    %v294 = vsub.f32 %v293, %v291
    %v295 = vmul.f32 %v66, 0.14285715
    %v296 = vmul.f32 %v69, 0.14285715
    %v297 = vmul.f32 %v72, 0.5
    %v298 = vmul.f32 %v75, 0.5
    %v299 = vadd.f32 %v295, %v297
    %v300 = vmin.f32 %v299, %v270
    %v301 = vsub.f32 %v295, %v297
    %v302 = vmax.f32 %v301, %v269
    %v303 = vsub.f32 %v300, %v302
    %v304 = vmax.f32 %v303, 0.0
    %v305 = vadd.f32 %v296, %v298
    %v306 = vmin.f32 %v305, %v273
    %v307 = vsub.f32 %v296, %v298
    %v308 = vmax.f32 %v307, %v272
    %v309 = vsub.f32 %v306, %v308
    %v310 = vmax.f32 %v309, 0.0
    %v311 = vmul.f32 %v304, %v310
    %v312 = vmul.f32 %v72, %v75
    %v313 = vadd.f32 %v312, %v274
    %v314 = vsub.f32 %v313, %v311
    %v315 = vmul.f32 %v311, %v294
    %v316 = vmul.f32 %v291, %v314
    %vm317 = vcmp.gt.f32.partialorder %v315, %v316
    %v318 = vsel %vm317, %v311, %v291
    %v319 = vsel %vm317, %v314, %v294
    %v320 = vsel %vm317, %v66, %v51
    %v321 = vsel %vm317, %v69, %v54
    %v322 = vsel %vm317, %v72, %v57
    %v323 = vsel %vm317, %v75, %v60
    %v324 = vsel %vm317, %v78, %v63
    %v325 = vsel %vm317, %v87, %v79
    %v326 = vsel %vm317, %v89, %v81
    %v327 = vsel %vm317, %v91, %v83
    %v328 = vsel %vm317, %v93, %v85
    %v329 = vrcp.pop %v319
    %v330 = vmul.f32 %v318, %v329
    %v331 = vsub.f32 %v320, %v325
    %v332 = vsub.f32 %v321, %v326
    %v333 = vmul.f32 %v331, %v331
    %v334 = vmul.f32 %v332, %v332
    %v335 = vadd.f32 %v333, %v334
    %v336 = vmax.f32 %v322, 0.0
    %v337 = vrsqrt.pop %v336
    %v338 = vmul.f32 %v336, %v337
    %vm339 = vcmp.eq.f32.partialorder %v336, inf
    %v340 = vsel %vm339, %v336, %v338
    %vm341 = vcmp.eq.f32.partialorder %v336, 0.0
    %v342 = vand.u32 %v336, 2147483648
    %v343 = vsel %vm341, %v342, %v340
    %v344 = vmax.f32 %v327, 0.0
    %v345 = vrsqrt.pop %v344
    %v346 = vmul.f32 %v344, %v345
    %vm347 = vcmp.eq.f32.partialorder %v344, inf
    %v348 = vsel %vm347, %v344, %v346
    %vm349 = vcmp.eq.f32.partialorder %v344, 0.0
    %v350 = vand.u32 %v344, 2147483648
    %v351 = vsel %vm349, %v350, %v348
    %v352 = vsub.f32 %v343, %v351
    %v353 = vmax.f32 %v323, 0.0
    %v354 = vrsqrt.pop %v353
    %v355 = vmul.f32 %v353, %v354
    %vm356 = vcmp.eq.f32.partialorder %v353, inf
    %v357 = vsel %vm356, %v353, %v355
    %vm358 = vcmp.eq.f32.partialorder %v353, 0.0
    %v359 = vand.u32 %v353, 2147483648
    %v360 = vsel %vm358, %v359, %v357
    %v361 = vmax.f32 %v328, 0.0
    %v362 = vrsqrt.pop %v361
    %v363 = vmul.f32 %v361, %v362
    %vm364 = vcmp.eq.f32.partialorder %v361, inf
    %v365 = vsel %vm364, %v361, %v363
    %vm366 = vcmp.eq.f32.partialorder %v361, 0.0
    %v367 = vand.u32 %v361, 2147483648
    %v368 = vsel %vm366, %v367, %v365
    %v369 = vsub.f32 %v360, %v368
    %v370 = vmul.f32 %v352, %v352
    %v371 = vmul.f32 %v369, %v369
    %v372 = vadd.f32 %v370, %v371
    %v373 = vsub.f32 %v324, %v330
    %v374 = vmul.f32 %v373, %v373
    %v375 = vadd.f32 %v335, %v372
    %v376 = vmul.f32 %v375, 5.0
    %v377 = vadd.f32 %v376, %v374
    %v378 = vadd.f32 %v377, %v265
    %v379 = vsel %vm98, %v378, 0.0
    %v380 = vmul.f32 %v105, 0.5
    %v381 = vsel %vm99, %v380, 0.0
    %v382 = vadd.f32 %v379, %v381
    %v383 = vadd.f32 %v382, 0.0
    %v384 = vld [vmem:[#allocation2] sm:$0xff]
    %v385 = vadd.f32 %v384, %v383
    %386 = vst [vmem:[#allocation2] sm:$0xff] %v385
    // Predicated region
    $region14: #{detect_loss_pallas.1} parent=1 // pred_check
      %p387 = pneg %p46
    $region15: #{detect_loss_pallas.1} parent=1 // pred_check_branch
      %389 = sbr.rel (%p387) target = $region17
    $region16: #{detect_loss_pallas.1} parent=1 // pred_region
      %v390 = vld [vmem:[#allocation2] sm:$0xff]
      %391 = vadd.xlane.f32.xlu0 %v390
      %v392 = vpop.xlane.xlu0 %391
      %v393 = vrot.slane %v392, 4
      %v394 = vadd.f32 %v392, %v393
      %v395 = vrot.slane %v394, 2
      %v396 = vadd.f32 %v394, %v395
      %v397 = vrot.slane %v396, 1
      %v398 = vadd.f32 %v396, %v397
      %s399 = vtos %v398
      %s400 = scalar_lea.smem [#allocation3], 0
      %401 = sst [smem:[%s400]] %s399
    $region17: #{detect_loss_pallas.1} parent=1 // pred_fallthru
      _
    // Predicated region
    $region18: #{detect_loss_pallas.1} parent=1 // pred_check
      _
    $region19: #{detect_loss_pallas.1} parent=1 // pred_check_branch
      %403 = sbr.rel (0) target = $region21
    $region20: #{detect_loss_pallas.1} parent=1 // pred_region
      %s405 = ssub.s32 16, 16
      %406 = vsyncadd [#allocation4], %s405
      %409 = dma.smem_to_hbm [#allocation3], 16, %s2, [#allocation4]
    $region21: #{detect_loss_pallas.1} parent=1 // pred_fallthru
      _
    // Predicated region
    $region22: #{detect_loss_pallas.1} parent=1 // pred_check
      _
    $region23: #{detect_loss_pallas.1} parent=1 // pred_check_branch
      %411 = sbr.rel (0) target = $region25
    $region24: #{detect_loss_pallas.1} parent=1 // pred_region
      %412 = dma.done [#allocation4], 16
    $region25: #{detect_loss_pallas.1} parent=1 // pred_fallthru
      _
    %413 = sfence
    %414 = vsyncpa [#allocation4], 1

</llo_original>
